<compile_context>
chip_gen: v7x
topology: tpu7x:2x2x1
jax: 0.10.0
libtpu: 0.0.40
codegen_flags: <defaults>
</compile_context>

<pallas_src>
import functools
import math

import jax
import jax.numpy as jnp
from jax import lax
from jax.experimental import pallas as pl
from jax.experimental.pallas import tpu as pltpu


# ----------------------------------------------------------------------------
# Tiling helpers
# ----------------------------------------------------------------------------
def _pick_tile(dim, preferred=(512, 256, 128)):
    """Largest preferred tile that evenly divides `dim`, else the full dim."""
    for t in preferred:
        if dim >= t and dim % t == 0:
            return t
    return dim


def _pick_head_chunk(num_heads, head_dim):
    """Smallest head chunk Hc dividing H with Hc*D a multiple of 128 lanes, else all heads."""
    for hc in range(1, num_heads + 1):
        if num_heads % hc == 0 and (hc * head_dim) % 128 == 0:
            return hc
    return num_heads


# ----------------------------------------------------------------------------
# Tiled linear projection kernel:  out = x @ W^T + b
#   x: (N, E_in), W: (E_out, E_in)  (torch layout, used untransposed), b: (E_out,)
# ----------------------------------------------------------------------------
def _linear_kernel(x_ref, w_ref, b_ref, o_ref, acc_ref):
    @pl.when(pl.program_id(2) == 0)
    def _():
        acc_ref[...] = jnp.zeros_like(acc_ref)

    # x (tm, tk) . W (tn, tk) -> (tm, tn), contracting the shared K dim (no HBM transpose).
    acc_ref[...] += lax.dot_general(
        x_ref[...], w_ref[...],
        dimension_numbers=(((1,), (1,)), ((), ())),
        preferred_element_type=jnp.float32)

    @pl.when(pl.program_id(2) == pl.num_programs(2) - 1)
    def _():
        o_ref[...] = (acc_ref[...] + b_ref[...]).astype(o_ref.dtype)


def linear_pallas(x2d, weight, bias):
    """x2d: (N, E_in); weight: (E_out, E_in) torch-layout; bias: (E_out,)."""
    N, E_in = x2d.shape
    E_out = weight.shape[0]
    tm = _pick_tile(N)
    tn = _pick_tile(E_out)
    tk = _pick_tile(E_in)
    grid = (N // tm, E_out // tn, E_in // tk)
    b2d = bias.reshape(1, E_out)
    return pl.pallas_call(
        _linear_kernel,
        out_shape=jax.ShapeDtypeStruct((N, E_out), x2d.dtype),
        grid=grid,
        in_specs=[
            pl.BlockSpec((tm, tk), lambda i, j, k: (i, k)),
            pl.BlockSpec((tn, tk), lambda i, j, k: (j, k)),
            pl.BlockSpec((1, tn), lambda i, j, k: (0, j)),
        ],
        out_specs=pl.BlockSpec((tm, tn), lambda i, j, k: (i, j)),
        scratch_shapes=[pltpu.VMEM((tm, tn), jnp.float32)],
        compiler_params=pltpu.CompilerParams(
            dimension_semantics=("parallel", "parallel", "arbitrary")),
    )(x2d, weight, b2d)


# ----------------------------------------------------------------------------
# Attention kernel over one (batch, head-chunk, query-tile):
#   q: (1, tq, Hc*D), k/v: (1, S, Hc*D), optional bias: (1, tq, S)
#   outputs: attention output (1, tq, Hc*D) and weights (1, Hc, tq, S)
# ----------------------------------------------------------------------------
def _attention_kernel(*refs, heads_per_block, head_dim, scale, has_bias):
    if has_bias:
        q_ref, k_ref, v_ref, b_ref, o_ref, w_ref = refs
    else:
        q_ref, k_ref, v_ref, o_ref, w_ref = refs
        b_ref = None

    q = q_ref[0] * scale                       # (tq, Hc*D), scaling fused here
    k = k_ref[0]                               # (S, Hc*D)
    v = v_ref[0]                               # (S, Hc*D)
    bias = b_ref[0] if has_bias else None      # (tq, S), 0 or -inf

    dn = (((1,), (1,)), ((), ()))              # contract head_dim of both operands
    for c in range(heads_per_block):           # static unroll over heads in the chunk
        lo, hi = c * head_dim, (c + 1) * head_dim
        qc = q[:, lo:hi]                       # (tq, D)
        kc = k[:, lo:hi]                       # (S, D)
        vc = v[:, lo:hi]                       # (S, D)

        s = lax.dot_general(qc, kc, dn, preferred_element_type=jnp.float32)  # (tq, S)
        if bias is not None:
            s = s + bias
        m = jnp.max(s, axis=-1, keepdims=True)
        p = jnp.exp(s - m)
        l = jnp.sum(p, axis=-1, keepdims=True)
        # EUP approximate reciprocal + one Newton step (f32 accuracy, no VPU divide).
        r = pl.reciprocal(l, approx=True)
        r = r * (2.0 - l * r)
        w = p * r

        w_ref[0, c] = w.astype(w_ref.dtype)
        oc = jnp.dot(w, vc, preferred_element_type=jnp.float32)              # (tq, D)
        o_ref[0, :, lo:hi] = oc.astype(o_ref.dtype)


def attention_pallas(q_arr, k_arr, v_arr, bias, *, B, T, S, H, D, Hc, tq,
                     q_off, k_off, v_off, scale, out_dtype):
    """q_arr/k_arr/v_arr: (B, L, E) or a shared (B, L, 3E) fused tensor; offsets select
    the head-chunk range along the last dim (block index = offset + head-chunk id)."""
    hd = Hc * D
    n_hc = H // Hc
    grid = (B, n_hc, T // tq)

    kernel = functools.partial(
        _attention_kernel, heads_per_block=Hc, head_dim=D, scale=scale,
        has_bias=bias is not None)

    in_specs = [
        pl.BlockSpec((1, tq, hd), lambda b, h, t: (b, t, h + q_off)),
        pl.BlockSpec((1, S, hd), lambda b, h, t: (b, 0, h + k_off)),
        pl.BlockSpec((1, S, hd), lambda b, h, t: (b, 0, h + v_off)),
    ]
    inputs = [q_arr, k_arr, v_arr]
    if bias is not None:
        in_specs.append(pl.BlockSpec((1, tq, S), lambda b, h, t: (b, t, 0)))
        inputs.append(bias)

    out_shape = (
        jax.ShapeDtypeStruct((B, T, H * D), out_dtype),      # attention output, (B, T, E)
        jax.ShapeDtypeStruct((B, H, T, S), jnp.float32),     # attention weights
    )
    out_specs = (
        pl.BlockSpec((1, tq, hd), lambda b, h, t: (b, t, h)),
        pl.BlockSpec((1, Hc, tq, S), lambda b, h, t: (b, h, t, 0)),
    )
    return pl.pallas_call(
        kernel,
        out_shape=out_shape,
        grid=grid,
        in_specs=in_specs,
        out_specs=out_specs,
        compiler_params=pltpu.CompilerParams(
            dimension_semantics=("parallel", "parallel", "parallel")),
    )(*inputs)


# ----------------------------------------------------------------------------
# Full MultiHeadAttention forward
# ----------------------------------------------------------------------------
def multi_head_attention(params, query, key, value, num_heads,
                         key_padding_mask=None, attn_mask=None):
    B, T, E = query.shape
    S = key.shape[1]
    H = num_heads
    D = E // H
    scaling = D ** (-0.5)

    Hc = _pick_head_chunk(H, D)
    hd = Hc * D
    n_hc = H // Hc
    tq = _pick_tile(T, (256, 128))

    # Fused QKV projection for self-attention (one pass over x, one kernel launch).
    # Requires 128-lane-aligned head chunks so blocks of the (B, T, 3E) tensor are legal.
    self_attention = (query is key) and (key is value)
    if self_attention and hd % 128 == 0:
        w_qkv = jnp.concatenate([params["Wq"], params["Wk"], params["Wv"]], axis=0)
        b_qkv = jnp.concatenate([params["bq"], params["bk"], params["bv"]], axis=0)
        qkv = linear_pallas(query.reshape(B * T, E), w_qkv, b_qkv).reshape(B, T, 3 * E)
        q_arr = k_arr = v_arr = qkv
        q_off, k_off, v_off = 0, n_hc, 2 * n_hc
    else:
        q_arr = linear_pallas(query.reshape(B * T, E),
                              params["Wq"], params["bq"]).reshape(B, T, E)
        k_arr = linear_pallas(key.reshape(B * S, E),
                              params["Wk"], params["bk"]).reshape(B, S, E)
        v_arr = linear_pallas(value.reshape(B * S, E),
                              params["Wv"], params["bv"]).reshape(B, S, E)
        q_off = k_off = v_off = 0

    # Additive mask bias kept compact at (B, T, S); never broadcast to (B, H, T, S) in HBM.
    bias = None
    if attn_mask is not None or key_padding_mask is not None:
        bias = jnp.zeros((B, T, S), jnp.float32)
        if attn_mask is not None:
            bias = jnp.where(attn_mask[None, :, :], -jnp.inf, bias)
        if key_padding_mask is not None:
            bias = jnp.where(key_padding_mask[:, None, :], -jnp.inf, bias)
        # NOTE: fully-masked rows produce NaN, matching the PyTorch module's behaviour.

    attn_out, attn_weights = attention_pallas(
        q_arr, k_arr, v_arr, bias,
        B=B, T=T, S=S, H=H, D=D, Hc=Hc, tq=tq,
        q_off=q_off, k_off=k_off, v_off=v_off,
        scale=scaling, out_dtype=query.dtype)

    # TODO(synk): training-mode dropout on attention probabilities is not implemented.
    output = linear_pallas(attn_out.reshape(B * T, E),
                           params["Wo"], params["bo"]).reshape(B, T, E)
    return output, attn_weights


# ----------------------------------------------------------------------------
# Pure-JAX reference for validation
# ----------------------------------------------------------------------------
def reference_mha(params, query, key, value, num_heads,
                  key_padding_mask=None, attn_mask=None):
    B, T, E = query.shape
    S = key.shape[1]
    H = num_heads
    D = E // H
    scaling = D ** (-0.5)
    q = (query @ params["Wq"].T + params["bq"]) * scaling
    k = key @ params["Wk"].T + params["bk"]
    v = value @ params["Wv"].T + params["bv"]
    q = q.reshape(B, T, H, D).transpose(0, 2, 1, 3)
    k = k.reshape(B, S, H, D).transpose(0, 2, 1, 3)
    v = v.reshape(B, S, H, D).transpose(0, 2, 1, 3)
    s = jnp.einsum("bhtd,bhsd->bhts", q, k)
    if attn_mask is not None:
        s = jnp.where(attn_mask[None, None, :, :], -jnp.inf, s)
    if key_padding_mask is not None:
        s = jnp.where(key_padding_mask[:, None, None, :], -jnp.inf, s)
    w = jax.nn.softmax(s, axis=-1)
    o = jnp.einsum("bhts,bhsd->bhtd", w, v)
    o = o.transpose(0, 2, 1, 3).reshape(B, T, E)
    out = o @ params["Wo"].T + params["bo"]
    return out, w


if __name__ == "__main__":
    def make_params(key_root, E):
        bound = 1.0 / math.sqrt(E)   # torch nn.Linear default init bound

        def u(k, shape):
            return jax.random.uniform(k, shape, jnp.float32, minval=-bound, maxval=bound)

        ks = jax.random.split(key_root, 8)
        return {
            "Wq": u(ks[0], (E, E)), "bq": u(ks[1], (E,)),
            "Wk": u(ks[2], (E, E)), "bk": u(ks[3], (E,)),
            "Wv": u(ks[4], (E, E)), "bv": u(ks[5], (E,)),
            "Wo": u(ks[6], (E, E)), "bo": u(ks[7], (E,)),
        }

    root = jax.random.PRNGKey(0)
    kp1, kq, kk, kv, kp2, kx = jax.random.split(root, 6)

    # ---- Test 1: cross-attention, no masks (separate projections, full-head chunk) ----
    B, T, S, E, H = 2, 8, 8, 32, 4
    params1 = make_params(kp1, E)
    query = jax.random.normal(kq, (B, T, E), jnp.float32)
    key_t = jax.random.normal(kk, (B, S, E), jnp.float32)
    value = jax.random.normal(kv, (B, S, E), jnp.float32)

    out1, w1 = multi_head_attention(params1, query, key_t, value, H)
    out1 = jax.block_until_ready(out1)
    w1 = jax.block_until_ready(w1)
    ref_out1, ref_w1 = reference_mha(params1, query, key_t, value, H)
    assert out1.shape == (B, T, E) and w1.shape == (B, H, T, S)
    assert jnp.allclose(out1, ref_out1, atol=1e-4, rtol=1e-4)
    assert jnp.allclose(w1, ref_w1, atol=1e-4, rtol=1e-4)

    # ---- Test 2: self-attention + masks (fused QKV projection, 128-lane head chunks) ----
    B2, L2, E2, H2 = 2, 16, 256, 2
    params2 = make_params(kp2, E2)
    x = jax.random.normal(kx, (B2, L2, E2), jnp.float32)
    causal = jnp.triu(jnp.ones((L2, L2), dtype=bool), k=1)          # attn_mask (T, S)
    kpm = jnp.zeros((B2, L2), dtype=bool).at[1, -3:].set(True)      # key_padding_mask (B, S)

    out2, w2 = multi_head_attention(params2, x, x, x, H2,
                                    key_padding_mask=kpm, attn_mask=causal)
    out2 = jax.block_until_ready(out2)
    w2 = jax.block_until_ready(w2)
    ref_out2, ref_w2 = reference_mha(params2, x, x, x, H2,
                                     key_padding_mask=kpm, attn_mask=causal)
    assert out2.shape == (B2, L2, E2) and w2.shape == (B2, H2, L2, L2)
    assert jnp.allclose(out2, ref_out2, atol=2e-3, rtol=2e-3)
    assert jnp.allclose(w2, ref_w2, atol=2e-3, rtol=2e-3)

    print("KERNEL_OK")
</pallas_src>

<mosaic_0001>
module attributes {stable_mosaic.version = 11 : i64} {
  func.func @_linear_kernel(%arg0: i32, %arg1: i32, %arg2: i32, %arg3: memref<16x32xf32, #tpu.memory_space<vmem>>, %arg4: memref<32x32xf32, #tpu.memory_space<vmem>>, %arg5: memref<1x32xf32, #tpu.memory_space<vmem>>, %arg6: memref<16x32xf32, #tpu.memory_space<vmem>>, %arg7: memref<16x32xf32, #tpu.memory_space<vmem>>) attributes {dimension_semantics = [#tpu.dimension_semantics<parallel>, #tpu.dimension_semantics<parallel>, #tpu.dimension_semantics<arbitrary>], iteration_bounds = array<i64: 1, 1, 1>, scalar_prefetch = 0 : i64, scratch_operands = 1 : i64, tpu.core_type = #tpu.core_type<tc>, window_params = [{transform_indices = @transform_0, window_bounds = array<i64: 16, 32>}, {transform_indices = @transform_1, window_bounds = array<i64: 32, 32>}, {transform_indices = @transform_2, window_bounds = array<i64: 1, 32>}, {transform_indices = @transform_3, window_bounds = array<i64: 16, 32>}]} {
    %c0_i32 = arith.constant 0 : i32
    %0 = arith.cmpi eq, %arg2, %c0_i32 : i32
    %1 = arith.extui %0 : i1 to i32
    %c0_i32_0 = arith.constant 0 : i32
    %2 = arith.cmpi ne, %1, %c0_i32_0 : i32
    scf.if %2 {
      %cst_10 = arith.constant 0.000000e+00 : f32
      %12 = vector.broadcast %cst_10 : f32 to vector<16x32xf32>
      %c0_11 = arith.constant 0 : index
      %c0_12 = arith.constant 0 : index
      %13 = vector.load %arg7[%c0_11, %c0_12] : memref<16x32xf32, #tpu.memory_space<vmem>>, vector<16x32xf32>
      tpu.vector_store %arg7[%c0_11, %c0_12], %12 {strides = array<i32>} : memref<16x32xf32, #tpu.memory_space<vmem>>, vector<16x32xf32>,
    } else {
    }
    %c0 = arith.constant 0 : index
    %c0_1 = arith.constant 0 : index
    %3 = vector.load %arg7[%c0, %c0_1] : memref<16x32xf32, #tpu.memory_space<vmem>>, vector<16x32xf32>
    %c0_2 = arith.constant 0 : index
    %c0_3 = arith.constant 0 : index
    %4 = vector.load %arg3[%c0_2, %c0_3] : memref<16x32xf32, #tpu.memory_space<vmem>>, vector<16x32xf32>
    %c0_4 = arith.constant 0 : index
    %c0_5 = arith.constant 0 : index
    %5 = vector.load %arg4[%c0_4, %c0_5] : memref<32x32xf32, #tpu.memory_space<vmem>>, vector<32x32xf32>
    %cst = arith.constant dense<0.000000e+00> : vector<16x32xf32>
    %6 = tpu.matmul %4, %5, %cst {dimension_numbers = #tpu.dot_dimension_numbers<[1], [1], [0], [0], [0, 0, 1, 0], [], []>} : vector<16x32xf32>, vector<32x32xf32>, vector<16x32xf32> -> vector<16x32xf32>
    %7 = arith.addf %3, %6 : vector<16x32xf32>
    %c0_6 = arith.constant 0 : index
    %c0_7 = arith.constant 0 : index
    %8 = vector.load %arg7[%c0_6, %c0_7] : memref<16x32xf32, #tpu.memory_space<vmem>>, vector<16x32xf32>
    tpu.vector_store %arg7[%c0_6, %c0_7], %7 {strides = array<i32>} : memref<16x32xf32, #tpu.memory_space<vmem>>, vector<16x32xf32>,
    %c0_i32_8 = arith.constant 0 : i32
    %9 = arith.cmpi eq, %arg2, %c0_i32_8 : i32
    %10 = arith.extui %9 : i1 to i32
    %c0_i32_9 = arith.constant 0 : i32
    %11 = arith.cmpi ne, %10, %c0_i32_9 : i32
    scf.if %11 {
      %c0_10 = arith.constant 0 : index
      %c0_11 = arith.constant 0 : index
      %12 = vector.load %arg7[%c0_10, %c0_11] : memref<16x32xf32, #tpu.memory_space<vmem>>, vector<16x32xf32>
      %c0_12 = arith.constant 0 : index
      %c0_13 = arith.constant 0 : index
      %13 = vector.load %arg5[%c0_12, %c0_13] : memref<1x32xf32, #tpu.memory_space<vmem>>, vector<1x32xf32>
      %14 = vector.broadcast %13 : vector<1x32xf32> to vector<16x32xf32>
      %15 = arith.addf %12, %14 : vector<16x32xf32>
      %c0_14 = arith.constant 0 : index
      %c0_15 = arith.constant 0 : index
      %16 = vector.load %arg6[%c0_14, %c0_15] : memref<16x32xf32, #tpu.memory_space<vmem>>, vector<16x32xf32>
      tpu.vector_store %arg6[%c0_14, %c0_15], %15 {strides = array<i32>} : memref<16x32xf32, #tpu.memory_space<vmem>>, vector<16x32xf32>,
    } else {
    }
    return
  }
  func.func @transform_0(%arg0: i32, %arg1: i32, %arg2: i32) -> (i32, i32) {
    %c0_i32 = arith.constant 0 : i32
    return %arg0, %arg2 : i32, i32
  }
  func.func @transform_1(%arg0: i32, %arg1: i32, %arg2: i32) -> (i32, i32) {
    %c0_i32 = arith.constant 0 : i32
    return %arg1, %arg2 : i32, i32
  }
  func.func @transform_2(%arg0: i32, %arg1: i32, %arg2: i32) -> (i32, i32) {
    %c0_i32 = arith.constant 0 : i32
    %c0_i32_0 = arith.constant 0 : i32
    return %c0_i32, %arg1 : i32, i32
  }
  func.func @transform_3(%arg0: i32, %arg1: i32, %arg2: i32) -> (i32, i32) {
    %c0_i32 = arith.constant 0 : i32
    return %arg0, %arg1 : i32, i32
  }
}

</mosaic_0001>

<llo_original>
// kernel: tpu_custom_call.1
$region0: #{tpu_custom_call.1}
  #allocation0 [shape = 'u32[]', space=smem, size = 0x4, offset = 0x4, fixed_abs, tag = 'smem constant byte address 0x4 - core index']
  #allocation1 [shape = 'u32[144,128]{1,0:T(1,128)}', space=vmem, size = 0x12000, scoped, tag = 'internal scratch']
  #allocation2 [shape = 'f32[16,32]{1,0:T(8,128)}', space=vmem, size = 0x2000, scoped, tag = 'scratch operand']
  %s0 = inlined_call_operand.hbm [shape: f32[16,32], index: 0, kind: input, shape index: {}]
  %s1 = inlined_call_operand.hbm [shape: f32[32,32], index: 1, kind: input, shape index: {}]
  %s2 = inlined_call_operand.vmem [shape: f32[1,32], index: 2, kind: input, shape index: {}]
  %s3 = inlined_call_operand.hbm [shape: f32[16,32], index: 3, kind: output, shape index: {}]
  %s4 = sld [smem:[#allocation0]]
  $region38: #{tpu_custom_call.1} parent=0
    _
  %s6 = ssub.s32 1, %s4
  %s7 = scalar_select 0, %s6, %s4
  $region1: #{tpu_custom_call.1} parent=0
    #allocation3 [shape = 'u8[8192]{0}', space=vmem, size = 0x2000, scoped, tag = 'input window, operand 0, single buffered']
    #allocation4 [shape = 's32[1]{0}', space=sflag, size = 0x4, scoped, tag = 'scoped memory for tpu_custom_call.1']
    #allocation5 [shape = 's32[1]{0}', space=sflag, size = 0x4, scoped, tag = 'scoped memory for tpu_custom_call.1']
    #allocation6 [shape = 'u8[16384]{0}', space=vmem, size = 0x4000, scoped, tag = 'input window, operand 1, single buffered']
    #allocation7 [shape = 's32[1]{0}', space=sflag, size = 0x4, scoped, tag = 'scoped memory for tpu_custom_call.1']
    #allocation8 [shape = 'u8[8192]{0}', space=vmem, size = 0x2000, scoped, tag = 'output window, operand 0, single buffered']
    %8 = vsyncpa [#allocation4], 0
    %9 = vsyncpa [#allocation7], 0
    %10 = vsyncpa [#allocation5], 0
    // Predicated region
    $region2: #{tpu_custom_call.1} parent=1 // pred_check
      _
    $region3: #{tpu_custom_call.1} parent=1 // pred_check_branch
      %12 = sbr.rel (0) target = $region5
    $region4: #{tpu_custom_call.1} parent=1 // pred_region
      %s14 = ssub.s32 256, 256
      %15 = vsyncadd [#allocation4], %s14
      %s16 = sshll.u32 [#allocation3], 4
      %s17 = int_to_ptr.vmem [resolvable:$true] %s16
      %22 = dma.hbm_to_vmem [thread:$0]  %s0, 256, %s17, [#allocation4], 128, 128, 8
    $region5: #{tpu_custom_call.1} parent=1 // pred_fallthru
      _
    // Predicated region
    $region6: #{tpu_custom_call.1} parent=1 // pred_check
      _
    $region7: #{tpu_custom_call.1} parent=1 // pred_check_branch
      %24 = sbr.rel (0) target = $region9
    $region8: #{tpu_custom_call.1} parent=1 // pred_region
      %s26 = ssub.s32 512, 512
      %27 = vsyncadd [#allocation7], %s26
      %s28 = sshll.u32 [#allocation6], 4
      %s29 = int_to_ptr.vmem [resolvable:$true] %s28
      %34 = dma.hbm_to_vmem [thread:$0]  %s1, 512, %s29, [#allocation7], 128, 128, 8
    $region9: #{tpu_custom_call.1} parent=1 // pred_fallthru
      _
    // Predicated region
    $region10: #{tpu_custom_call.1} parent=1 // pred_check
      _
    $region11: #{tpu_custom_call.1} parent=1 // pred_check_branch
      %36 = sbr.rel (0) target = $region13
    $region12: #{tpu_custom_call.1} parent=1 // pred_region
      _
    $region13: #{tpu_custom_call.1} parent=1 // pred_fallthru
      _
    // Predicated region
    $region14: #{tpu_custom_call.1} parent=1 // pred_check
      _
    $region15: #{tpu_custom_call.1} parent=1 // pred_check_branch
      %38 = sbr.rel (0) target = $region17
    $region16: #{tpu_custom_call.1} parent=1 // pred_region
      %39 = dma.done [#allocation4], 256
    $region17: #{tpu_custom_call.1} parent=1 // pred_fallthru
      _
    // Predicated region
    $region18: #{tpu_custom_call.1} parent=1 // pred_check
      _
    $region19: #{tpu_custom_call.1} parent=1 // pred_check_branch
      %41 = sbr.rel (0) target = $region21
    $region20: #{tpu_custom_call.1} parent=1 // pred_region
      %42 = dma.done [#allocation7], 512
    $region21: #{tpu_custom_call.1} parent=1 // pred_fallthru
      _
    %p43 = scmp.eq.s32.totalorder 0, 0
    // Predicated region
    $region22: #{tpu_custom_call.1} parent=1 // pred_check
      %p44 = pneg %p43
    $region23: #{tpu_custom_call.1} parent=1 // pred_check_branch
      %46 = sbr.rel (%p44) target = $region25
    $region24: #{tpu_custom_call.1} parent=1 // pred_region
      %vm47 = vcmask 261120
      %48 = vst.msk [vmem:[#allocation2] sm:$0xff] %vm47, 0.0
      %49 = vst.msk [vmem:[#allocation2 + $0x8] sm:$0xff] %vm47, 0.0
    $region25: #{tpu_custom_call.1} parent=1 // pred_fallthru
      _
    %v50 = vld [vmem:[#allocation2] sm:$0xff]
    %v51 = vld [vmem:[#allocation2 + $0x8] sm:$0xff]
    %v52 = vld [vmem:[#allocation3] sm:$0xff]
    %v53 = vld [vmem:[#allocation3 + $0x8] sm:$0xff]
    %v54 = vld [vmem:[#allocation6] sm:$0xff]
    %v55 = vld [vmem:[#allocation6 + $0x8] sm:$0xff]
    %v56 = vld [vmem:[#allocation6 + $0x10] sm:$0xff]
    %v57 = vld [vmem:[#allocation6 + $0x18] sm:$0xff]
    %vm58 = vcmask 261120
    %v60 = vsel %vm58, %v52, 0
    %v63 = vsel %vm58, %v53, 0
    %v66 = vsel %vm58, %v54, 0
    %v69 = vsel %vm58, %v55, 0
    %v72 = vsel %vm58, %v56, 0
    %v75 = vsel %vm58, %v57, 0
    %77 = vmatprep.subr.mxu0 0.0
    %78 = vmatpush1.xpose.msra.mxu0 %v66
    %79 = vmatprep.subr.mxu0 0.0
    %80 = vmatpush1.xpose.msra.mxu0 %v69
    %81 = vmatprep.subr.mxu0 0.0
    %82 = vmatpush1.xpose.msra.mxu0 %v72
    %83 = vmatprep.subr.mxu0 0.0
    %84 = vmatpush1.xpose.msra.mxu0 %v75
    %85 = vmatprep.subr.mxu0 0.0
    %86 = vmatpush1.xpose.msra.mxu0 0.0
    %87 = vmatprep.subr.mxu0 0.0
    %88 = vmatpush1.xpose.msra.mxu0 0.0
    %89 = vmatprep.subr.mxu0 0.0
    %90 = vmatpush1.xpose.msra.mxu0 0.0
    %91 = vmatprep.subr.mxu0 0.0
    %92 = vmatpush1.xpose.msra.mxu0 0.0
    %93 = vmatprep.subr.mxu0 0.0
    %94 = vmatpush1.xpose.msra.mxu0 0.0
    %95 = vmatprep.subr.mxu0 0.0
    %96 = vmatpush1.xpose.msra.mxu0 0.0
    %97 = vmatprep.subr.mxu0 0.0
    %98 = vmatpush1.xpose.msra.mxu0 0.0
    %99 = vmatprep.subr.mxu0 0.0
    %100 = vmatpush1.xpose.msra.mxu0 0.0
    %101 = vmatprep.subr.mxu0 0.0
    %102 = vmatpush1.xpose.msra.mxu0 0.0
    %103 = vmatprep.subr.mxu0 0.0
    %104 = vmatpush1.xpose.msra.mxu0 0.0
    %105 = vmatprep.subr.mxu0 0.0
    %106 = vmatpush1.xpose.msra.mxu0 0.0
    %107 = vmatprep.subr.mxu0 0.0
    %108 = vmatpush1.xpose.msra.mxu0 0.0
    %109 = vmatprep.subr.mxu0 0.0
    %110 = vmatpush1.xpose.msra.mxu0 0.0
    %111 = vmatprep.subr.mxu0 0.0
    %112 = vmatpush1.xpose.msra.mxu0 0.0
    %113 = vmatprep.subr.mxu0 0.0
    %114 = vmatpush1.xpose.msra.mxu0 0.0
    %115 = vmatprep.subr.mxu0 0.0
    %116 = vmatpush1.xpose.msra.mxu0 0.0
    %117 = vmatprep.subr.mxu0 0.0
    %118 = vmatpush1.xpose.msra.mxu0 0.0
    %119 = vmatprep.subr.mxu0 0.0
    %120 = vmatpush1.xpose.msra.mxu0 0.0
    %121 = vmatprep.subr.mxu0 0.0
    %122 = vmatpush1.xpose.msra.mxu0 0.0
    %123 = vmatprep.subr.mxu0 0.0
    %124 = vmatpush1.xpose.msra.mxu0 0.0
    %125 = vmatprep.subr.mxu0 0.0
    %126 = vmatpush1.xpose.msra.mxu0 0.0
    %127 = vmatprep.subr.mxu0 0.0
    %128 = vmatpush1.xpose.msra.mxu0 0.0
    %129 = vmatprep.subr.mxu0 0.0
    %130 = vmatpush1.xpose.msra.mxu0 0.0
    %131 = vmatprep.subr.mxu0 0.0
    %132 = vmatpush1.xpose.msra.mxu0 0.0
    %133 = vmatprep.subr.mxu0 0.0
    %134 = vmatpush1.xpose.msra.mxu0 0.0
    %135 = vmatprep.subr.mxu0 0.0
    %136 = vmatpush1.xpose.msra.mxu0 0.0
    %137 = vmatprep.subr.mxu0 0.0
    %138 = vmatpush1.xpose.msra.mxu0 0.0
    %139 = vmatprep.subr.mxu0 0.0
    %140 = vmatpush1.xpose.msra.mxu0 0.0
    %141 = vmatprep.mubr.f32.mxu0 0.0
    %142 = vmatmul.mubr.f32.gmra.mrb[0].mxu0 %v60
    %v143 = vpop.f32.mrb[0].mxu0
    %v144 = vadd.f32 0.0, %v143
    %v145 = vpop.f32.mrb[0].mxu0
    %146 = vmatprep.mubr.f32.mxu0 0.0
    %147 = vmatmul.mubr.f32.gmra.mrb[0].mxu0 %v63
    %v148 = vpop.f32.mrb[0].mxu0
    %v149 = vadd.f32 0.0, %v148
    %v150 = vpop.f32.mrb[0].mxu0
    %151 = vdwg.mxu0
    %v152 = vadd.f32 %v50, %v144
    %v153 = vadd.f32 %v51, %v149
    %154 = vst.msk [vmem:[#allocation2] sm:$0xff] %vm58, %v152
    %155 = vst.msk [vmem:[#allocation2 + $0x8] sm:$0xff] %vm58, %v153
    // Predicated region
    $region26: #{tpu_custom_call.1} parent=1 // pred_check
      %p156 = pneg %p43
    $region27: #{tpu_custom_call.1} parent=1 // pred_check_branch
      %158 = sbr.rel (%p156) target = $region29
    $region28: #{tpu_custom_call.1} parent=1 // pred_region
      %v159 = vld [vmem:[#allocation2] sm:$0xff]
      %v160 = vld [vmem:[#allocation2 + $0x8] sm:$0xff]
      %v161 = vld [vmem:[%s2] sm:$0x1]
      %v163 = vlaneseq
      %v164 = vshrl.u32 %v163, 7
      %v165 = vsub.s32 0, %v164
      %v166 = vrot.slane %v161, %v165
      %v168 = vadd.f32 %v159, %v166
      %v169 = vadd.f32 %v160, %v166
      %170 = vst.msk [vmem:[#allocation8] sm:$0xff] %vm58, %v168
      %171 = vst.msk [vmem:[#allocation8 + $0x8] sm:$0xff] %vm58, %v169
    $region29: #{tpu_custom_call.1} parent=1 // pred_fallthru
      _
    // Predicated region
    $region30: #{tpu_custom_call.1} parent=1 // pred_check
      _
    $region31: #{tpu_custom_call.1} parent=1 // pred_check_branch
      %173 = sbr.rel (0) target = $region33
    $region32: #{tpu_custom_call.1} parent=1 // pred_region
      %s175 = ssub.s32 256, 256
      %176 = vsyncadd [#allocation5], %s175
      %s177 = sshll.u32 [#allocation8], 4
      %s178 = int_to_ptr.vmem [resolvable:$true] %s177
      %183 = dma.vmem_to_hbm [thread:$0]  %s178, 256, %s3, [#allocation5], 128, 128, 8
    $region33: #{tpu_custom_call.1} parent=1 // pred_fallthru
      _
    // Predicated region
    $region34: #{tpu_custom_call.1} parent=1 // pred_check
      _
    $region35: #{tpu_custom_call.1} parent=1 // pred_check_branch
      %185 = sbr.rel (0) target = $region37
    $region36: #{tpu_custom_call.1} parent=1 // pred_region
      %186 = dma.done [#allocation5], 256
    $region37: #{tpu_custom_call.1} parent=1 // pred_fallthru
      _
    %187 = vsyncpa [#allocation4], 1
    %188 = vsyncpa [#allocation7], 1
    %189 = vsyncpa [#allocation5], 1

</llo_original>
